<compile_context>
chip_gen: v5e
topology: v5e:2x2
jax: 0.10.0
libtpu: 0.0.40
codegen_flags: <defaults>
</compile_context>

<pallas_src>
import jax
import jax.numpy as jnp
from jax.experimental import pallas as pl
from jax.experimental.pallas import tpu as pltpu


# ------------------------------ Pallas kernel ---------------------------------

def _make_gcn_kernel(tb, s, np_, tn, has_res):
    """Fused conv1(1x1) + bias + residual + ReLU + conv2(1x1) (+ bias).

    Block shapes seen by the kernel:
      x_ref   : (tb, s, np_)  bf16   (full padded node dim; conv1 contracts it)
      res_ref : (tb, s, tn)   f32    (only in the scene-feat branch)
      w1t_ref : (np_, tn)     bf16
      b1_ref  : (1, tn)       f32
      w2_ref  : (s, s)        bf16
      b2_ref  : (s, 1)        f32
      o_ref   : (tb, s, tn)   f32
    """

    def body(x_ref, res_ref, w1t_ref, b1_ref, w2_ref, b2_ref, o_ref):
        # conv1 over num_node with the batch block folded into the MXU M dim.
        x2d = x_ref[...].reshape(tb * s, np_)
        h = jnp.dot(x2d, w1t_ref[...], preferred_element_type=jnp.float32)
        h = h + b1_ref[...]                                    # (tb*s, tn) f32

        w2 = w2_ref[...]
        b2 = b2_ref[...]
        if not has_res:
            # residual tile offset inside the resident x block (128-aligned).
            off = pl.multiple_of(pl.program_id(1) * tn, 128)

        for b in range(tb):                                    # small static loop
            if has_res:
                res_b = res_ref[b]                             # (s, tn) f32
            else:
                res_b = x_ref[b, :, pl.ds(off, tn)].astype(jnp.float32)
            hb = jnp.maximum(h[b * s:(b + 1) * s, :] + res_b, 0.0)
            # conv2 over num_state: out = W2 @ h (bf16 operands, f32 accumulate)
            out_b = jnp.dot(w2, hb.astype(jnp.bfloat16),
                            preferred_element_type=jnp.float32)
            o_ref[b] = (out_b + b2).astype(o_ref.dtype)

    if has_res:
        def kernel(x_ref, res_ref, w1t_ref, b1_ref, w2_ref, b2_ref, o_ref):
            body(x_ref, res_ref, w1t_ref, b1_ref, w2_ref, b2_ref, o_ref)
    else:
        def kernel(x_ref, w1t_ref, b1_ref, w2_ref, b2_ref, o_ref):
            body(x_ref, None, w1t_ref, b1_ref, w2_ref, b2_ref, o_ref)
    return kernel


# ------------------------------ tiling helpers ---------------------------------

def _vmem_limit_bytes():
    """Generation-aware VMEM limit: ~3/4 of capacity, capped at 100 MiB."""
    cap = 64 * 1024 * 1024
    try:
        cap = int(pltpu.get_tpu_info().vmem_capacity_bytes)
    except Exception:
        pass
    return max(32 * 1024 * 1024, min((cap * 3) // 4, 100 * 1024 * 1024))


def _estimate_vmem(tb, tn, s, np_, has_res):
    """Rough per-grid-step VMEM footprint (double-buffered I/O + intermediates)."""
    b = 0
    b += 2 * (tb * s * np_) * 2            # x (bf16), double-buffered
    if has_res:
        b += 2 * (tb * s * tn) * 4         # residual (f32), double-buffered
    b += 2 * (np_ * tn) * 2                # W1^T tile (bf16)
    b += 2 * (s * s) * 2                   # W2 (bf16)
    b += 2 * (tn * 4 + s * 4)              # biases
    b += 2 * (tb * s * tn) * 4             # output tile (f32)
    b += (tb * s * tn) * 10                # live intermediates (h f32 + bf16 + out)
    return b


def _select_tiles(batch, s, np_, vmem_limit, has_res):
    """Pick (TB batches per step, node tile) that fit comfortably in VMEM."""
    budget = int(vmem_limit * 0.6)
    tn_cands = [t for t in (2048, 1024, 512, 256, 128) if np_ % t == 0]
    if not tn_cands:
        tn_cands = [128]
    max_tb = max(1, min(batch, 1024 // max(s, 1), 16))
    tb_cands = [t for t in range(max_tb, 0, -1) if batch % t == 0]
    for tb in tb_cands:
        for tn in tn_cands:
            if _estimate_vmem(tb, tn, s, np_, has_res) <= budget:
                return tb, tn
    return 1, tn_cands[-1]


# ------------------------------ wrapper -----------------------------------------

def _scene_interaction(x, scene_feat):
    """x_p term of the 'amtl-t1'/'mtl-t1' branch (plain-JAX glue).

    x: (B, S, N).  AvgPool1d(128, 1) over num_state, then matmul with
    scene_feat ((B, S-127, S)), permuted back to (B, S, N).
    """
    # TODO(synk): scene-feature interaction (AvgPool1d + matmul) stays plain
    # JAX glue feeding the fused kernel via the residual input.
    xp = jnp.transpose(x, (0, 2, 1))                       # (B, N, S)
    cs = jnp.cumsum(xp, axis=-1)
    cs = jnp.pad(cs, ((0, 0), (0, 0), (1, 0)))
    pooled = (cs[..., 128:] - cs[..., :-128]) / 128.0      # (B, N, S-127)
    x_p = jnp.matmul(pooled, scene_feat)                   # (B, N, S)
    return jnp.transpose(x_p, (0, 2, 1))                   # (B, S, N)


def gcn_forward(params, x, scene_feat=None, model_type=None):
    """GCN.forward.  x: (B, num_state, num_node) -> (B, num_state, num_node)."""
    x = x.astype(jnp.float32)
    B, S, N = x.shape

    w1 = params["conv1_w"]          # (num_node, num_node)  Conv1d weight[..., 0]
    b1 = params["conv1_b"]          # (num_node,)
    w2 = params["conv2_w"]          # (num_state, num_state)
    b2 = params.get("conv2_b")      # (num_state,) or None (bias=False default)

    # pad num_node up to a lane-aligned multiple of 128 (unmasked stores / MXU)
    Np = max(128, ((N + 127) // 128) * 128)
    pad_n = Np - N

    has_res = (model_type in ("amtl-t1", "mtl-t1")) and scene_feat is not None
    res = None
    if has_res:
        # PyTorch: h = conv1(x) ; h = h + x + x_p ; so the pre-ReLU residual is
        # (x + x_p) while conv1 runs on x alone -- matched here.
        res = x + _scene_interaction(x, scene_feat)
        if pad_n:
            res = jnp.pad(res, ((0, 0), (0, 0), (0, pad_n)))

    x_bf = x.astype(jnp.bfloat16)
    if pad_n:
        x_bf = jnp.pad(x_bf, ((0, 0), (0, 0), (0, pad_n)))

    w1t = jnp.transpose(w1).astype(jnp.bfloat16)           # (N_in, N_out)
    b1p = b1.astype(jnp.float32)
    if pad_n:
        w1t = jnp.pad(w1t, ((0, pad_n), (0, pad_n)))
        b1p = jnp.pad(b1p, ((0, pad_n),))
    b1_2d = b1p.reshape(1, Np)

    w2_bf = w2.astype(jnp.bfloat16)                        # (S_out, S_in)
    if b2 is None:
        b2 = jnp.zeros((S,), jnp.float32)
    b2_2d = b2.astype(jnp.float32).reshape(S, 1)

    vmem_limit = _vmem_limit_bytes()
    tb, tn = _select_tiles(B, S, Np, vmem_limit, has_res)
    grid = (B // tb, Np // tn)

    kernel = _make_gcn_kernel(tb, S, Np, tn, has_res)

    in_specs = [pl.BlockSpec((tb, S, Np), lambda bi, j: (bi, 0, 0))]   # x slab
    args = [x_bf]
    if has_res:
        in_specs.append(pl.BlockSpec((tb, S, tn), lambda bi, j: (bi, 0, j)))
        args.append(res)
    in_specs += [
        pl.BlockSpec((Np, tn), lambda bi, j: (0, j)),      # W1^T tile
        pl.BlockSpec((1, tn), lambda bi, j: (0, j)),       # conv1 bias tile
        pl.BlockSpec((S, S), lambda bi, j: (0, 0)),        # W2 (resident)
        pl.BlockSpec((S, 1), lambda bi, j: (0, 0)),        # conv2 bias
    ]
    args += [w1t, b1_2d, w2_bf, b2_2d]

    out_p = pl.pallas_call(
        kernel,
        out_shape=jax.ShapeDtypeStruct((B, S, Np), jnp.float32),
        grid=grid,
        in_specs=in_specs,
        out_specs=pl.BlockSpec((tb, S, tn), lambda bi, j: (bi, 0, j)),
        compiler_params=pltpu.CompilerParams(
            dimension_semantics=("parallel", "parallel"),
            vmem_limit_bytes=vmem_limit,
        ),
    )(*args)

    return out_p[:, :, :N] if pad_n else out_p


# ------------------------------ params / reference ----------------------------

def _conv1d_init(key, cout, cin, with_bias):
    """Matches PyTorch Conv1d default init (kaiming_uniform_, a=sqrt(5), k=1)."""
    wkey, bkey = jax.random.split(key)
    bound = 1.0 / (cin ** 0.5)
    w = jax.random.uniform(wkey, (cout, cin), jnp.float32, -bound, bound)
    b = (jax.random.uniform(bkey, (cout,), jnp.float32, -bound, bound)
         if with_bias else None)
    return w, b


def init_gcn_params(key, num_state, num_node, bias=False):
    k1, k2 = jax.random.split(key)
    w1, b1 = _conv1d_init(k1, num_node, num_node, with_bias=True)
    w2, b2 = _conv1d_init(k2, num_state, num_state, with_bias=bias)
    params = {"conv1_w": w1, "conv1_b": b1, "conv2_w": w2}
    if b2 is not None:
        params["conv2_b"] = b2
    return params


def gcn_reference(params, x):
    """Plain-JAX f32 reference of the default forward path."""
    w1, b1, w2 = params["conv1_w"], params["conv1_b"], params["conv2_w"]
    h = jnp.einsum("bsn,on->bso", x, w1) + b1
    h = jax.nn.relu(h + x)
    out = jnp.einsum("bsn,cs->bcn", h, w2)
    if "conv2_b" in params:
        out = out + params["conv2_b"][None, :, None]
    return out


# ------------------------------ main ------------------------------------------

if __name__ == "__main__":
    key = jax.random.PRNGKey(0)
    pkey, xkey = jax.random.split(key)

    B, NUM_STATE, NUM_NODE = 2, 64, 32      # small shapes implied by the module
    params = init_gcn_params(pkey, num_state=NUM_STATE, num_node=NUM_NODE,
                             bias=False)
    x = jax.random.normal(xkey, (B, NUM_STATE, NUM_NODE), jnp.float32)

    fwd = jax.jit(lambda inp: gcn_forward(params, inp))
    out = fwd(x)
    jax.block_until_ready(out)

    assert out.shape == (B, NUM_STATE, NUM_NODE)

    ref = gcn_reference(params, x)
    max_err = float(jnp.max(jnp.abs(out - ref)))
    # bf16 MXU operands (incl. the bf16-rounded residual) vs. f32 reference.
    assert max_err < 1e-1, f"max abs error vs f32 reference too large: {max_err}"

    print("KERNEL_OK")
</pallas_src>

<mosaic_0001>
module attributes {stable_mosaic.version = 11 : i64} {
  func.func @kernel(%arg0: i32, %arg1: i32, %arg2: memref<2x64x128xbf16, #tpu.memory_space<vmem>>, %arg3: memref<128x128xbf16, #tpu.memory_space<vmem>>, %arg4: memref<1x128xf32, #tpu.memory_space<vmem>>, %arg5: memref<64x64xbf16, #tpu.memory_space<vmem>>, %arg6: memref<64x1xf32, #tpu.memory_space<vmem>>, %arg7: memref<2x64x128xf32, #tpu.memory_space<vmem>>) attributes {dimension_semantics = [#tpu.dimension_semantics<parallel>, #tpu.dimension_semantics<parallel>], iteration_bounds = array<i64: 1, 1>, scalar_prefetch = 0 : i64, scratch_operands = 0 : i64, tpu.core_type = #tpu.core_type<tc>, window_params = [{transform_indices = @transform_0, window_bounds = array<i64: 2, 64, 128>}, {transform_indices = @transform_1, window_bounds = array<i64: 128, 128>}, {transform_indices = @transform_2, window_bounds = array<i64: 1, 128>}, {pipeline_mode = #tpu.pipeline_mode<synchronous>, transform_indices = @transform_3, window_bounds = array<i64: 64, 64>}, {pipeline_mode = #tpu.pipeline_mode<synchronous>, transform_indices = @transform_4, window_bounds = array<i64: 64, 1>}, {transform_indices = @transform_5, window_bounds = array<i64: 2, 64, 128>}]} {
    %c0 = arith.constant 0 : index
    %c0_0 = arith.constant 0 : index
    %c0_1 = arith.constant 0 : index
    %0 = vector.load %arg2[%c0, %c0_0, %c0_1] : memref<2x64x128xbf16, #tpu.memory_space<vmem>>, vector<2x64x128xbf16>
    %1 = vector.shape_cast %0 : vector<2x64x128xbf16> to vector<128x128xbf16>
    %c0_2 = arith.constant 0 : index
    %c0_3 = arith.constant 0 : index
    %2 = vector.load %arg3[%c0_2, %c0_3] : memref<128x128xbf16, #tpu.memory_space<vmem>>, vector<128x128xbf16>
    %cst = arith.constant dense<0.000000e+00> : vector<128x128xf32>
    %3 = tpu.matmul %1, %2, %cst {dimension_numbers = #tpu.dot_dimension_numbers<[1], [0], [0], [1], [0, 0, 1, 1], [], []>} : vector<128x128xbf16>, vector<128x128xbf16>, vector<128x128xf32> -> vector<128x128xf32>
    %c0_4 = arith.constant 0 : index
    %c0_5 = arith.constant 0 : index
    %4 = vector.load %arg4[%c0_4, %c0_5] : memref<1x128xf32, #tpu.memory_space<vmem>>, vector<1x128xf32>
    %5 = vector.broadcast %4 : vector<1x128xf32> to vector<128x128xf32>
    %6 = arith.addf %3, %5 : vector<128x128xf32>
    %c0_6 = arith.constant 0 : index
    %c0_7 = arith.constant 0 : index
    %7 = vector.load %arg5[%c0_6, %c0_7] : memref<64x64xbf16, #tpu.memory_space<vmem>>, vector<64x64xbf16>
    %c0_8 = arith.constant 0 : index
    %c0_9 = arith.constant 0 : index
    %8 = vector.load %arg6[%c0_8, %c0_9] : memref<64x1xf32, #tpu.memory_space<vmem>>, vector<64x1xf32>
    %c128_i32 = arith.constant 128 : i32
    %9 = arith.muli %arg1, %c128_i32 : i32
    %10 = tpu.assume_multiple %9, 128 : i32
    %c0_10 = arith.constant 0 : index
    %c0_11 = arith.constant 0 : index
    %11 = arith.index_cast %10 : i32 to index
    %12 = vector.load %arg2[%c0_10, %c0_11, %11] : memref<2x64x128xbf16, #tpu.memory_space<vmem>>, vector<1x64x128xbf16>
    %13 = vector.shape_cast %12 : vector<1x64x128xbf16> to vector<64x128xbf16>
    %14 = arith.extf %13 : vector<64x128xbf16> to vector<64x128xf32>
    %15 = vector.extract_strided_slice %6 {offsets = [0, 0], sizes = [64, 128], strides = [1, 1]} : vector<128x128xf32> to vector<64x128xf32>
    %16 = arith.addf %15, %14 : vector<64x128xf32>
    %cst_12 = arith.constant 0.000000e+00 : f32
    %17 = vector.broadcast %cst_12 : f32 to vector<64x128xf32>
    %18 = arith.maximumf %16, %17 : vector<64x128xf32>
    %19 = arith.truncf %18 : vector<64x128xf32> to vector<64x128xbf16>
    %cst_13 = arith.constant dense<0.000000e+00> : vector<64x128xf32>
    %20 = tpu.matmul %7, %19, %cst_13 {dimension_numbers = #tpu.dot_dimension_numbers<[1], [0], [0], [1], [0, 0, 1, 1], [], []>} : vector<64x64xbf16>, vector<64x128xbf16>, vector<64x128xf32> -> vector<64x128xf32>
    %21 = vector.broadcast %8 : vector<64x1xf32> to vector<64x128xf32>
    %22 = arith.addf %20, %21 : vector<64x128xf32>
    %c0_14 = arith.constant 0 : index
    %c0_15 = arith.constant 0 : index
    %c0_16 = arith.constant 0 : index
    %23 = vector.load %arg7[%c0_14, %c0_15, %c0_16] : memref<2x64x128xf32, #tpu.memory_space<vmem>>, vector<1x64x128xf32>
    %24 = vector.shape_cast %23 : vector<1x64x128xf32> to vector<64x128xf32>
    %25 = vector.shape_cast %22 : vector<64x128xf32> to vector<1x64x128xf32>
    tpu.vector_store %arg7[%c0_14, %c0_15, %c0_16], %25 {strides = array<i32>} : memref<2x64x128xf32, #tpu.memory_space<vmem>>, vector<1x64x128xf32>,
    %c1 = arith.constant 1 : index
    %c0_17 = arith.constant 0 : index
    %26 = arith.index_cast %10 : i32 to index
    %27 = vector.load %arg2[%c1, %c0_17, %26] : memref<2x64x128xbf16, #tpu.memory_space<vmem>>, vector<1x64x128xbf16>
    %28 = vector.shape_cast %27 : vector<1x64x128xbf16> to vector<64x128xbf16>
    %29 = arith.extf %28 : vector<64x128xbf16> to vector<64x128xf32>
    %30 = vector.extract_strided_slice %6 {offsets = [64, 0], sizes = [64, 128], strides = [1, 1]} : vector<128x128xf32> to vector<64x128xf32>
    %31 = arith.addf %30, %29 : vector<64x128xf32>
    %cst_18 = arith.constant 0.000000e+00 : f32
    %32 = vector.broadcast %cst_18 : f32 to vector<64x128xf32>
    %33 = arith.maximumf %31, %32 : vector<64x128xf32>
    %34 = arith.truncf %33 : vector<64x128xf32> to vector<64x128xbf16>
    %cst_19 = arith.constant dense<0.000000e+00> : vector<64x128xf32>
    %35 = tpu.matmul %7, %34, %cst_19 {dimension_numbers = #tpu.dot_dimension_numbers<[1], [0], [0], [1], [0, 0, 1, 1], [], []>} : vector<64x64xbf16>, vector<64x128xbf16>, vector<64x128xf32> -> vector<64x128xf32>
    %36 = vector.broadcast %8 : vector<64x1xf32> to vector<64x128xf32>
    %37 = arith.addf %35, %36 : vector<64x128xf32>
    %c1_20 = arith.constant 1 : index
    %c0_21 = arith.constant 0 : index
    %c0_22 = arith.constant 0 : index
    %38 = vector.load %arg7[%c1_20, %c0_21, %c0_22] : memref<2x64x128xf32, #tpu.memory_space<vmem>>, vector<1x64x128xf32>
    %39 = vector.shape_cast %38 : vector<1x64x128xf32> to vector<64x128xf32>
    %40 = vector.shape_cast %37 : vector<64x128xf32> to vector<1x64x128xf32>
    tpu.vector_store %arg7[%c1_20, %c0_21, %c0_22], %40 {strides = array<i32>} : memref<2x64x128xf32, #tpu.memory_space<vmem>>, vector<1x64x128xf32>,
    return
  }
  func.func @transform_0(%arg0: i32, %arg1: i32) -> (i32, i32, i32) {
    %c0_i32 = arith.constant 0 : i32
    %c0_i32_0 = arith.constant 0 : i32
    %c0_i32_1 = arith.constant 0 : i32
    return %arg0, %c0_i32, %c0_i32_0 : i32, i32, i32
  }
  func.func @transform_1(%arg0: i32, %arg1: i32) -> (i32, i32) {
    %c0_i32 = arith.constant 0 : i32
    %c0_i32_0 = arith.constant 0 : i32
    return %c0_i32, %arg1 : i32, i32
  }
  func.func @transform_2(%arg0: i32, %arg1: i32) -> (i32, i32) {
    %c0_i32 = arith.constant 0 : i32
    %c0_i32_0 = arith.constant 0 : i32
    return %c0_i32, %arg1 : i32, i32
  }
  func.func @transform_3(%arg0: i32, %arg1: i32) -> (i32, i32) {
    %c0_i32 = arith.constant 0 : i32
    %c0_i32_0 = arith.constant 0 : i32
    %c0_i32_1 = arith.constant 0 : i32
    return %c0_i32, %c0_i32_0 : i32, i32
  }
  func.func @transform_4(%arg0: i32, %arg1: i32) -> (i32, i32) {
    %c0_i32 = arith.constant 0 : i32
    %c0_i32_0 = arith.constant 0 : i32
    %c0_i32_1 = arith.constant 0 : i32
    return %c0_i32, %c0_i32_0 : i32, i32
  }
  func.func @transform_5(%arg0: i32, %arg1: i32) -> (i32, i32, i32) {
    %c0_i32 = arith.constant 0 : i32
    %c0_i32_0 = arith.constant 0 : i32
    return %arg0, %c0_i32, %arg1 : i32, i32, i32
  }
}

</mosaic_0001>

<llo_original>
// kernel: _lambda_.1
$region0: #{_lambda_.1}
  #allocation0 [shape = 'u32[]', space=smem, size = 0x4, offset = 0x4, fixed_abs, tag = 'smem constant byte address 0x4 - core index']
  #allocation1 [shape = 'u32[72,128]{1,0:T(1,128)}', space=vmem, size = 0x9000, scoped, tag = 'internal scratch']
  %s0 = inlined_call_operand.vmem [shape: bf16[2,64,128], index: 0, kind: input, shape index: {}]
  %s1 = inlined_call_operand.vmem [shape: bf16[128,128], index: 1, kind: input, shape index: {}]
  %s2 = inlined_call_operand.vmem [shape: f32[1,128], index: 2, kind: input, shape index: {}]
  %s3 = inlined_call_operand.vmem [shape: bf16[64,64], index: 3, kind: input, shape index: {}]
  %s4 = inlined_call_operand.vmem [shape: f32[64,1], index: 4, kind: input, shape index: {}]
  %s5 = inlined_call_operand.vmem [shape: f32[2,64,128], index: 5, kind: output, shape index: {}]
  %s6 = sld [smem:[#allocation0]]
  $region30: #{_lambda_.1} parent=0
    _
  %s8 = ssub.s32 1, %s6
  %s9 = scalar_select 0, %s8, %s6
  // Predicated region
  $region2: #{_lambda_.1} parent=0 // pred_check
    _
  $region3: #{_lambda_.1} parent=0 // pred_check_branch
    %11 = sbr.rel (0) target = $region5
  $region4: #{_lambda_.1} parent=0 // pred_region
    _
  $region5: #{_lambda_.1} parent=0 // pred_fallthru
    _
  // Predicated region
  $region6: #{_lambda_.1} parent=0 // pred_check
    _
  $region7: #{_lambda_.1} parent=0 // pred_check_branch
    %13 = sbr.rel (0) target = $region9
  $region8: #{_lambda_.1} parent=0 // pred_region
    _
  $region9: #{_lambda_.1} parent=0 // pred_fallthru
    _
  // Predicated region
  $region10: #{_lambda_.1} parent=0 // pred_check
    _
  $region11: #{_lambda_.1} parent=0 // pred_check_branch
    %15 = sbr.rel (0) target = $region13
  $region12: #{_lambda_.1} parent=0 // pred_region
    _
  $region13: #{_lambda_.1} parent=0 // pred_fallthru
    _
  // Predicated region
  $region14: #{_lambda_.1} parent=0 // pred_check
    _
  $region15: #{_lambda_.1} parent=0 // pred_check_branch
    %17 = sbr.rel (0) target = $region17
  $region16: #{_lambda_.1} parent=0 // pred_region
    _
  $region17: #{_lambda_.1} parent=0 // pred_fallthru
    _
  // Predicated region
  $region18: #{_lambda_.1} parent=0 // pred_check
    _
  $region19: #{_lambda_.1} parent=0 // pred_check_branch
    %19 = sbr.rel (0) target = $region21
  $region20: #{_lambda_.1} parent=0 // pred_region
    _
  $region21: #{_lambda_.1} parent=0 // pred_fallthru
    _
  %v21 = vld [vmem:[%s0] sm:$0xf]
  %v22 = vld [vmem:[%s0 + $0x4] sm:$0xf]
  %v23 = vld [vmem:[%s0 + $0x8] sm:$0xf]
  %v24 = vld [vmem:[%s0 + $0xc] sm:$0xf]
  %v25 = vld [vmem:[%s0 + $0x10] sm:$0xf]
  %v26 = vld [vmem:[%s0 + $0x14] sm:$0xf]
  %v27 = vld [vmem:[%s0 + $0x18] sm:$0xf]
  %v28 = vld [vmem:[%s0 + $0x1c] sm:$0xf]
  %v29 = vld [vmem:[%s0 + $0x20] sm:$0xf]
  %v30 = vld [vmem:[%s0 + $0x24] sm:$0xf]
  %v31 = vld [vmem:[%s0 + $0x28] sm:$0xf]
  %v32 = vld [vmem:[%s0 + $0x2c] sm:$0xf]
  %v33 = vld [vmem:[%s0 + $0x30] sm:$0xf]
  %v34 = vld [vmem:[%s0 + $0x34] sm:$0xf]
  %v35 = vld [vmem:[%s0 + $0x38] sm:$0xf]
  %v36 = vld [vmem:[%s0 + $0x3c] sm:$0xf]
  %v37 = vld [vmem:[%s1] sm:$0xf]
  %v38 = vld [vmem:[%s1 + $0x4] sm:$0xf]
  %v39 = vld [vmem:[%s1 + $0x8] sm:$0xf]
  %v40 = vld [vmem:[%s1 + $0xc] sm:$0xf]
  %v41 = vld [vmem:[%s1 + $0x10] sm:$0xf]
  %v42 = vld [vmem:[%s1 + $0x14] sm:$0xf]
  %v43 = vld [vmem:[%s1 + $0x18] sm:$0xf]
  %v44 = vld [vmem:[%s1 + $0x1c] sm:$0xf]
  %v45 = vld [vmem:[%s1 + $0x20] sm:$0xf]
  %v46 = vld [vmem:[%s1 + $0x24] sm:$0xf]
  %v47 = vld [vmem:[%s1 + $0x28] sm:$0xf]
  %v48 = vld [vmem:[%s1 + $0x2c] sm:$0xf]
  %v49 = vld [vmem:[%s1 + $0x30] sm:$0xf]
  %v50 = vld [vmem:[%s1 + $0x34] sm:$0xf]
  %v51 = vld [vmem:[%s1 + $0x38] sm:$0xf]
  %v52 = vld [vmem:[%s1 + $0x3c] sm:$0xf]
  %v53 = vld [vmem:[%s2] sm:$0x1]
  %v55 = vperm.slane %v53, 0
  %v73 = vunpack.c.l.b16 %v21
  %v74 = vunpack.c.l.b16 %v22
  %v75 = vunpack.c.l.b16 %v23
  %v76 = vunpack.c.l.b16 %v24
  %v77 = vunpack.c.l.b16 %v25
  %v78 = vunpack.c.l.b16 %v26
  %v79 = vunpack.c.l.b16 %v27
  %v80 = vunpack.c.l.b16 %v28
  %v81 = vunpack.c.l.b16 %v29
  %v82 = vunpack.c.l.b16 %v30
  %v83 = vunpack.c.l.b16 %v31
  %v84 = vunpack.c.l.b16 %v32
  %v85 = vunpack.c.l.b16 %v33
  %v86 = vunpack.c.l.b16 %v34
  %v87 = vunpack.c.l.b16 %v35
  %v88 = vunpack.c.l.b16 %v36
  %v89 = vpack.c.b16 %v74, %v73
  %v90 = vpack.c.b16 %v76, %v75
  %v91 = vpack.c.b16 %v78, %v77
  %v92 = vpack.c.b16 %v80, %v79
  %v93 = vpack.c.b16 %v82, %v81
  %v94 = vpack.c.b16 %v84, %v83
  %v95 = vpack.c.b16 %v86, %v85
  %v96 = vpack.c.b16 %v88, %v87
  %v121 = vunpack.c.l.b16 %v37
  %v122 = vunpack.c.l.b16 %v38
  %v123 = vunpack.c.l.b16 %v39
  %v124 = vunpack.c.l.b16 %v40
  %v125 = vunpack.c.l.b16 %v41
  %v126 = vunpack.c.l.b16 %v42
  %v127 = vunpack.c.l.b16 %v43
  %v128 = vunpack.c.l.b16 %v44
  %v129 = vunpack.c.l.b16 %v45
  %v130 = vunpack.c.l.b16 %v46
  %v131 = vunpack.c.l.b16 %v47
  %v132 = vunpack.c.l.b16 %v48
  %v133 = vunpack.c.l.b16 %v49
  %v134 = vunpack.c.l.b16 %v50
  %v135 = vunpack.c.l.b16 %v51
  %v136 = vunpack.c.l.b16 %v52
  %v137 = vpack.c.b16 %v122, %v121
  %v138 = vpack.c.b16 %v124, %v123
  %v139 = vpack.c.b16 %v126, %v125
  %v140 = vpack.c.b16 %v128, %v127
  %v141 = vpack.c.b16 %v130, %v129
  %v142 = vpack.c.b16 %v132, %v131
  %v143 = vpack.c.b16 %v134, %v133
  %v144 = vpack.c.b16 %v136, %v135
  %153 = vmatpush.bf16.msra.mxu0 %v144
  %154 = vmatpush.bf16.msra.mxu0 %v143
  %155 = vmatpush.bf16.msra.mxu0 %v142
  %156 = vmatpush.bf16.msra.mxu0 %v141
  %157 = vmatpush.bf16.msra.mxu0 %v140
  %158 = vmatpush.bf16.msra.mxu0 %v139
  %159 = vmatpush.bf16.msra.mxu0 %v138
  %160 = vmatpush.bf16.msra.mxu0 %v137
  %161 = vmatmul.bf16.gmra.mxu0 %v89
  %v162 = vpop.f32.mrf.mxu0
  %v163 = vadd.f32 %v55, %v162
  %v164 = vpop.f32.mrf.mxu0
  %v165 = vadd.f32 %v55, %v164
  %166 = vmatmul.bf16.gmra.mxu0 %v90
  %v167 = vpop.f32.mrf.mxu0
  %v168 = vadd.f32 %v55, %v167
  %v169 = vpop.f32.mrf.mxu0
  %v170 = vadd.f32 %v55, %v169
  %171 = vmatmul.bf16.gmra.mxu0 %v91
  %v172 = vpop.f32.mrf.mxu0
  %v173 = vadd.f32 %v55, %v172
  %v174 = vpop.f32.mrf.mxu0
  %v175 = vadd.f32 %v55, %v174
  %176 = vmatmul.bf16.gmra.mxu0 %v92
  %v177 = vpop.f32.mrf.mxu0
  %v178 = vadd.f32 %v55, %v177
  %v179 = vpop.f32.mrf.mxu0
  %v180 = vadd.f32 %v55, %v179
  %181 = vmatmul.bf16.gmra.mxu0 %v93
  %v182 = vpop.f32.mrf.mxu0
  %v183 = vadd.f32 %v55, %v182
  %v184 = vpop.f32.mrf.mxu0
  %v185 = vadd.f32 %v55, %v184
  %186 = vmatmul.bf16.gmra.mxu0 %v94
  %v187 = vpop.f32.mrf.mxu0
  %v188 = vadd.f32 %v55, %v187
  %v189 = vpop.f32.mrf.mxu0
  %v190 = vadd.f32 %v55, %v189
  %191 = vmatmul.bf16.gmra.mxu0 %v95
  %v192 = vpop.f32.mrf.mxu0
  %v193 = vadd.f32 %v55, %v192
  %v194 = vpop.f32.mrf.mxu0
  %v195 = vadd.f32 %v55, %v194
  %196 = vmatmul.bf16.gmra.mxu0 %v96
  %v197 = vpop.f32.mrf.mxu0
  %v198 = vadd.f32 %v55, %v197
  %v199 = vpop.f32.mrf.mxu0
  %v200 = vadd.f32 %v55, %v199
  %201 = vdwg.mxu0
  %v202 = vld [vmem:[%s3] sm:$0xf]
  %v203 = vld [vmem:[%s3 + $0x4] sm:$0xf]
  %v204 = vld [vmem:[%s3 + $0x8] sm:$0xf]
  %v205 = vld [vmem:[%s3 + $0xc] sm:$0xf]
  %v206 = vld [vmem:[%s3 + $0x10] sm:$0xf]
  %v207 = vld [vmem:[%s3 + $0x14] sm:$0xf]
  %v208 = vld [vmem:[%s3 + $0x18] sm:$0xf]
  %v209 = vld [vmem:[%s3 + $0x1c] sm:$0xf]
  %v210 = vld [vmem:[%s4] sm:$0xff]
  %v211 = vld [vmem:[%s4 + $0x8] sm:$0xff]
  %v212 = vld [vmem:[%s4 + $0x10] sm:$0xff]
  %v213 = vld [vmem:[%s4 + $0x18] sm:$0xff]
  %v214 = vld [vmem:[%s4 + $0x20] sm:$0xff]
  %v215 = vld [vmem:[%s4 + $0x28] sm:$0xff]
  %v216 = vld [vmem:[%s4 + $0x30] sm:$0xff]
  %v217 = vld [vmem:[%s4 + $0x38] sm:$0xff]
  %s218 = smul.u32 0, 128
  %s219 = sshra.s32 %s218, 7
  %s220 = sand.u32 %s218, 127
  %s221 = smul.addr %s219, 4
  %s222 = scalar_lea.vmem %s0, %s221
  %v223 = vld [vmem:[%s222] sm:$0xf]
  %v224 = vld [vmem:[%s222 + $0x4] sm:$0xf]
  %v225 = vld [vmem:[%s222 + $0x8] sm:$0xf]
  %v226 = vld [vmem:[%s222 + $0xc] sm:$0xf]
  %v227 = vld [vmem:[%s222 + $0x10] sm:$0xf]
  %v228 = vld [vmem:[%s222 + $0x14] sm:$0xf]
  %v229 = vld [vmem:[%s222 + $0x18] sm:$0xf]
  %v230 = vld [vmem:[%s222 + $0x1c] sm:$0xf]
  %v231 = vunpack.c.l.bf16 %v223
  %v232 = vunpack.c.l.bf16 %v224
  %v233 = vunpack.c.l.bf16 %v225
  %v234 = vunpack.c.l.bf16 %v226
  %v235 = vunpack.c.l.bf16 %v227
  %v236 = vunpack.c.l.bf16 %v228
  %v237 = vunpack.c.l.bf16 %v229
  %v238 = vunpack.c.l.bf16 %v230
  %v239 = vadd.f32 %v163, %v231
  %v240 = vadd.f32 %v165, %v232
  %v241 = vadd.f32 %v168, %v233
  %v242 = vadd.f32 %v170, %v234
  %v243 = vadd.f32 %v173, %v235
  %v244 = vadd.f32 %v175, %v236
  %v245 = vadd.f32 %v178, %v237
  %v246 = vadd.f32 %v180, %v238
  %v247 = vmax.f32 %v239, 0.0
  %v248 = vmax.f32 %v240, 0.0
  %v249 = vmax.f32 %v241, 0.0
  %v250 = vmax.f32 %v242, 0.0
  %v251 = vmax.f32 %v243, 0.0
  %v252 = vmax.f32 %v244, 0.0
  %v253 = vmax.f32 %v245, 0.0
  %v254 = vmax.f32 %v246, 0.0
  %v255 = vpack.c.bf16 %v248, %v247
  %v256 = vpack.c.bf16 %v250, %v249
  %v257 = vpack.c.bf16 %v252, %v251
  %v258 = vpack.c.bf16 %v254, %v253
  %260 = vset.pattern.permute.xlu0 0
  %261 = vperm.xlu0 %260, %v210
  %v262 = vpop.permute.xlu0 %261
  %265 = vset.pattern.permute.xlu0 0
  %266 = vperm.xlu0 %265, %v211
  %v267 = vpop.permute.xlu0 %266
  %270 = vset.pattern.permute.xlu0 0
  %271 = vperm.xlu0 %270, %v212
  %v272 = vpop.permute.xlu0 %271
  %275 = vset.pattern.permute.xlu0 0
  %276 = vperm.xlu0 %275, %v213
  %v277 = vpop.permute.xlu0 %276
  %280 = vset.pattern.permute.xlu0 0
  %281 = vperm.xlu0 %280, %v214
  %v282 = vpop.permute.xlu0 %281
  %285 = vset.pattern.permute.xlu0 0
  %286 = vperm.xlu0 %285, %v215
  %v287 = vpop.permute.xlu0 %286
  %290 = vset.pattern.permute.xlu0 0
  %291 = vperm.xlu0 %290, %v216
  %v292 = vpop.permute.xlu0 %291
  %295 = vset.pattern.permute.xlu0 0
  %296 = vperm.xlu0 %295, %v217
  %v297 = vpop.permute.xlu0 %296
  %v307 = vunpack.c.l.b16 %v202
  %v308 = vunpack.c.l.b16 %v203
  %v309 = vunpack.c.l.b16 %v204
  %v310 = vunpack.c.l.b16 %v205
  %v311 = vunpack.c.l.b16 %v206
  %v312 = vunpack.c.l.b16 %v207
  %v313 = vunpack.c.l.b16 %v208
  %v314 = vunpack.c.l.b16 %v209
  %v315 = vpack.c.b16 %v308, %v307
  %v316 = vpack.c.b16 %v310, %v309
  %v317 = vpack.c.b16 %v312, %v311
  %v318 = vpack.c.b16 %v314, %v313
  %vm319 = vcmask 523264
  %v321 = vsel %vm319, %v315, 0
  %v324 = vsel %vm319, %v316, 0
  %v327 = vsel %vm319, %v317, 0
  %v330 = vsel %vm319, %v318, 0
  %332 = vmatpush.bf16.msra.mxu0 0
  %333 = vmatpush.bf16.msra.mxu0 0
  %334 = vmatpush.bf16.msra.mxu0 0
  %335 = vmatpush.bf16.msra.mxu0 0
  %336 = vmatpush.bf16.msra.mxu0 %v258
  %337 = vmatpush.bf16.msra.mxu0 %v257
  %338 = vmatpush.bf16.msra.mxu0 %v256
  %339 = vmatpush.bf16.msra.mxu0 %v255
  %340 = vmatmul.bf16.gmra.mxu0 %v321
  %v341 = vpop.f32.mrf.mxu0
  %v342 = vadd.f32 %v262, %v341
  %v343 = vpop.f32.mrf.mxu0
  %v344 = vadd.f32 %v267, %v343
  %345 = vmatmul.bf16.gmra.mxu0 %v324
  %v346 = vpop.f32.mrf.mxu0
  %v347 = vadd.f32 %v272, %v346
  %v348 = vpop.f32.mrf.mxu0
  %v349 = vadd.f32 %v277, %v348
  %350 = vmatmul.bf16.gmra.mxu0 %v327
  %v351 = vpop.f32.mrf.mxu0
  %v352 = vadd.f32 %v282, %v351
  %v353 = vpop.f32.mrf.mxu0
  %v354 = vadd.f32 %v287, %v353
  %355 = vmatmul.bf16.gmra.mxu0 %v330
  %v356 = vpop.f32.mrf.mxu0
  %v357 = vadd.f32 %v292, %v356
  %v358 = vpop.f32.mrf.mxu0
  %v359 = vadd.f32 %v297, %v358
  %360 = vdwg.mxu0
  %361 = vst [vmem:[%s5] sm:$0xff] %v342
  %362 = vst [vmem:[%s5 + $0x8] sm:$0xff] %v344
  %363 = vst [vmem:[%s5 + $0x10] sm:$0xff] %v347
  %364 = vst [vmem:[%s5 + $0x18] sm:$0xff] %v349
  %365 = vst [vmem:[%s5 + $0x20] sm:$0xff] %v352
  %366 = vst [vmem:[%s5 + $0x28] sm:$0xff] %v354
  %367 = vst [vmem:[%s5 + $0x30] sm:$0xff] %v357
  %368 = vst [vmem:[%s5 + $0x38] sm:$0xff] %v359
  %s369 = sadd.s32 %s219, 8
  %s370 = smul.addr %s369, 4
  %s371 = scalar_lea.vmem %s0, %s370
  %v372 = vld [vmem:[%s371] sm:$0xf]
  %v373 = vld [vmem:[%s371 + $0x4] sm:$0xf]
  %v374 = vld [vmem:[%s371 + $0x8] sm:$0xf]
  %v375 = vld [vmem:[%s371 + $0xc] sm:$0xf]
  %v376 = vld [vmem:[%s371 + $0x10] sm:$0xf]
  %v377 = vld [vmem:[%s371 + $0x14] sm:$0xf]
  %v378 = vld [vmem:[%s371 + $0x18] sm:$0xf]
  %v379 = vld [vmem:[%s371 + $0x1c] sm:$0xf]
  %v380 = vunpack.c.l.bf16 %v372
  %v381 = vunpack.c.l.bf16 %v373
  %v382 = vunpack.c.l.bf16 %v374
  %v383 = vunpack.c.l.bf16 %v375
  %v384 = vunpack.c.l.bf16 %v376
  %v385 = vunpack.c.l.bf16 %v377
  %v386 = vunpack.c.l.bf16 %v378
  %v387 = vunpack.c.l.bf16 %v379
  %v388 = vadd.f32 %v183, %v380
  %v389 = vadd.f32 %v185, %v381
  %v390 = vadd.f32 %v188, %v382
  %v391 = vadd.f32 %v190, %v383
  %v392 = vadd.f32 %v193, %v384
  %v393 = vadd.f32 %v195, %v385
  %v394 = vadd.f32 %v198, %v386
  %v395 = vadd.f32 %v200, %v387
  %v396 = vmax.f32 %v388, 0.0
  %v397 = vmax.f32 %v389, 0.0
  %v398 = vmax.f32 %v390, 0.0
  %v399 = vmax.f32 %v391, 0.0
  %v400 = vmax.f32 %v392, 0.0
  %v401 = vmax.f32 %v393, 0.0
  %v402 = vmax.f32 %v394, 0.0
  %v403 = vmax.f32 %v395, 0.0
  %v404 = vpack.c.bf16 %v397, %v396
  %v405 = vpack.c.bf16 %v399, %v398
  %v406 = vpack.c.bf16 %v401, %v400
  %v407 = vpack.c.bf16 %v403, %v402
  %408 = vmatpush.bf16.msra.mxu0 0
  %409 = vmatpush.bf16.msra.mxu0 0
  %410 = vmatpush.bf16.msra.mxu0 0
  %411 = vmatpush.bf16.msra.mxu0 0
  %412 = vmatpush.bf16.msra.mxu0 %v407
  %413 = vmatpush.bf16.msra.mxu0 %v406
  %414 = vmatpush.bf16.msra.mxu0 %v405
  %415 = vmatpush.bf16.msra.mxu0 %v404
  %416 = vmatmul.bf16.gmra.mxu0 %v321
  %v417 = vpop.f32.mrf.mxu0
  %v418 = vadd.f32 %v262, %v417
  %v419 = vpop.f32.mrf.mxu0
  %v420 = vadd.f32 %v267, %v419
  %421 = vmatmul.bf16.gmra.mxu0 %v324
  %v422 = vpop.f32.mrf.mxu0
  %v423 = vadd.f32 %v272, %v422
  %v424 = vpop.f32.mrf.mxu0
  %v425 = vadd.f32 %v277, %v424
  %426 = vmatmul.bf16.gmra.mxu0 %v327
  %v427 = vpop.f32.mrf.mxu0
  %v428 = vadd.f32 %v282, %v427
  %v429 = vpop.f32.mrf.mxu0
  %v430 = vadd.f32 %v287, %v429
  %431 = vmatmul.bf16.gmra.mxu0 %v330
  %v432 = vpop.f32.mrf.mxu0
  %v433 = vadd.f32 %v292, %v432
  %v434 = vpop.f32.mrf.mxu0
  %v435 = vadd.f32 %v297, %v434
  %436 = vdwg.mxu0
  %s437 = scalar_lea.vmem %s5, 64
  %438 = vst [vmem:[%s437] sm:$0xff] %v418
  %439 = vst [vmem:[%s437 + $0x8] sm:$0xff] %v420
  %440 = vst [vmem:[%s437 + $0x10] sm:$0xff] %v423
  %441 = vst [vmem:[%s437 + $0x18] sm:$0xff] %v425
  %442 = vst [vmem:[%s437 + $0x20] sm:$0xff] %v428
  %443 = vst [vmem:[%s437 + $0x28] sm:$0xff] %v430
  %444 = vst [vmem:[%s437 + $0x30] sm:$0xff] %v433
  %445 = vst [vmem:[%s437 + $0x38] sm:$0xff] %v435
  // Predicated region
  $region22: #{_lambda_.1} parent=0 // pred_check
    _
  $region23: #{_lambda_.1} parent=0 // pred_check_branch
    %447 = sbr.rel (0) target = $region25
  $region24: #{_lambda_.1} parent=0 // pred_region
    _
  $region25: #{_lambda_.1} parent=0 // pred_fallthru
    _
  // Predicated region
  $region26: #{_lambda_.1} parent=0 // pred_check
    _
  $region27: #{_lambda_.1} parent=0 // pred_check_branch
    %449 = sbr.rel (0) target = $region29
  $region28: #{_lambda_.1} parent=0 // pred_region
    _
  $region29: #{_lambda_.1} parent=0 // pred_fallthru
    _

</llo_original>
